<compile_context>
chip_gen: v7x
topology: tpu7x:2x2x1
jax: 0.10.0
libtpu: 0.0.40
codegen_flags: <defaults>
</compile_context>

<pallas_src>
import functools

import jax
import jax.numpy as jnp
from jax.experimental import pallas as pl
from jax.experimental.pallas import tpu as pltpu


# 48 MiB scoped VMEM: above the 16/32 MiB defaults, under v7x's 64 MiB physical.
_VMEM_LIMIT_BYTES = 48 * 1024 * 1024


def _round_up(x, m):
    return ((x + m - 1) // m) * m


def _pick_tiles(n):
    """Return (n_pad, tile_m, tile_k): lane/sublane aligned, tiles divide n_pad."""
    if n <= 512:
        n_pad = _round_up(n, 128)
        return n_pad, n_pad, n_pad
    # 256x512 bf16 A tiles = 256 KiB per buffer -> fits v5e/v6e/v7x comfortably
    # with double-buffering, a resident (tk, F_out) XW slab and an f32 acc.
    return _round_up(n, 512), 256, 512


# ----------------------------------------------------------------------------
# Kernel 1: feature transform  XW = X @ W   (row-tiled, done once per layer)
# ----------------------------------------------------------------------------
def _feature_transform_kernel(x_ref, w_ref, o_ref):
    o_ref[...] = jnp.dot(x_ref[...], w_ref[...],
                         preferred_element_type=jnp.float32).astype(o_ref.dtype)


# ----------------------------------------------------------------------------
# Kernel 2: aggregation  out = relu(A_norm @ XW + b)
#           grid = (row tiles i  [parallel], reduction tiles k [arbitrary])
# ----------------------------------------------------------------------------
def _aggregate_kernel(a_ref, xw_ref, b_ref, o_ref, acc_ref):
    k = pl.program_id(1)

    @pl.when(k == 0)
    def _():
        acc_ref[...] = jnp.zeros_like(acc_ref)

    acc_ref[...] += jnp.dot(a_ref[...], xw_ref[...],
                            preferred_element_type=jnp.float32)

    @pl.when(k == pl.num_programs(1) - 1)
    def _():
        o_ref[...] = jnp.maximum(acc_ref[...] + b_ref[...], 0.0).astype(o_ref.dtype)


def gcn_layer(a_bf16, x, w, b, *, n, n_pad, tm, tk):
    """One myGCN layer followed by F.relu: relu(A_norm @ (x @ W) + b)."""
    f_in, f_out = w.shape
    f_in_p = _round_up(f_in, 128)
    f_out_p = _round_up(f_out, 128)

    x_p = jnp.pad(x.astype(jnp.float32), ((0, n_pad - n), (0, f_in_p - f_in)))
    w_p = jnp.pad(w.astype(jnp.float32),
                  ((0, f_in_p - f_in), (0, f_out_p - f_out)))
    b_p = jnp.pad(b.astype(jnp.float32), (0, f_out_p - f_out)).reshape(1, f_out_p)

    # --- stage 1: XW (hoisted out of the A-tiled loop; O(N*F_in*F_out)) ------
    xw = pl.pallas_call(
        _feature_transform_kernel,
        out_shape=jax.ShapeDtypeStruct((n_pad, f_out_p), jnp.bfloat16),
        grid_spec=pltpu.PrefetchScalarGridSpec(
            num_scalar_prefetch=0,
            grid=(n_pad // tm,),
            in_specs=[pl.BlockSpec((tm, f_in_p), lambda i: (i, 0)),
                      pl.BlockSpec((f_in_p, f_out_p), lambda i: (0, 0))],
            out_specs=pl.BlockSpec((tm, f_out_p), lambda i: (i, 0))),
        compiler_params=pltpu.CompilerParams(
            dimension_semantics=("parallel",),
            vmem_limit_bytes=_VMEM_LIMIT_BYTES),
        cost_estimate=pl.CostEstimate(
            flops=2 * n_pad * f_in_p * f_out_p,
            transcendentals=0,
            bytes_accessed=(n_pad * f_in_p + f_in_p * f_out_p) * 4
                           + n_pad * f_out_p * 2),
    )(x_p, w_p)

    # --- stage 2: A @ XW + bias, ReLU; O(N^2*F_out), A streams as bf16 -------
    out = pl.pallas_call(
        _aggregate_kernel,
        out_shape=jax.ShapeDtypeStruct((n_pad, f_out_p), jnp.float32),
        grid_spec=pltpu.PrefetchScalarGridSpec(
            num_scalar_prefetch=0,
            grid=(n_pad // tm, n_pad // tk),
            in_specs=[pl.BlockSpec((tm, tk), lambda i, k: (i, k)),        # A_norm
                      pl.BlockSpec((tk, f_out_p), lambda i, k: (k, 0)),   # XW
                      pl.BlockSpec((1, f_out_p), lambda i, k: (0, 0))],   # bias
            out_specs=pl.BlockSpec((tm, f_out_p), lambda i, k: (i, 0)),
            scratch_shapes=[pltpu.VMEM((tm, f_out_p), jnp.float32)]),
        compiler_params=pltpu.CompilerParams(
            dimension_semantics=("parallel", "arbitrary"),
            vmem_limit_bytes=_VMEM_LIMIT_BYTES),
        cost_estimate=pl.CostEstimate(
            flops=2 * n_pad * n_pad * f_out_p,
            transcendentals=0,
            bytes_accessed=n_pad * n_pad * 2 + n_pad * f_out_p * 2
                           + n_pad * f_out_p * 4 + f_out_p * 4),
    )(a_bf16, xw, b_p)

    return out[:n, :f_out]


# ----------------------------------------------------------------------------
# Glue: myGCN.norm — dense normalized adjacency from the edge list (plain JAX,
# scatter/gather index plumbing; per-layer hot path stays in the kernels).
# ----------------------------------------------------------------------------
def build_norm_adj(edge_index, num_nodes, edge_weight=None, improved=False):
    row, col = edge_index[0], edge_index[1]
    e = row.shape[0]
    if edge_weight is None:
        edge_weight = jnp.ones((e,), dtype=jnp.float32)
    fill_value = 2.0 if improved else 1.0

    is_loop = row == col
    # off-diagonal part: A[c, r] += w for every non-self-loop edge r -> c
    w_off = jnp.where(is_loop, 0.0, edge_weight)
    adj = jnp.zeros((num_nodes, num_nodes), jnp.float32).at[col, row].add(w_off)

    # add_remaining_self_loops: each node gets exactly one self loop whose
    # weight is its existing self-loop weight (if any) else fill_value.
    loop_w = jnp.full((num_nodes,), fill_value, jnp.float32)
    loop_idx = jnp.where(is_loop, row, num_nodes)          # OOB index -> dropped
    loop_w = loop_w.at[loop_idx].set(edge_weight, mode="drop")
    adj = adj + jnp.diag(loop_w)

    # deg = scatter_add(edge_weight, col) over the self-loop-augmented edges
    deg = adj.sum(axis=1)
    deg_inv_sqrt = jnp.power(deg, -0.5)
    deg_inv_sqrt = jnp.where(jnp.isinf(deg_inv_sqrt), 0.0, deg_inv_sqrt)

    # norm_e = dinv[row] * w_e * dinv[col]  ->  dense: dinv[c] * A[c,r] * dinv[r]
    return deg_inv_sqrt[:, None] * adj * deg_inv_sqrt[None, :]


# ----------------------------------------------------------------------------
# homoGraph (multi_relational=False, start_graph=False)
# ----------------------------------------------------------------------------
def init_homograph_params(key, nhid_list):
    """Glorot-uniform weights, zero bias — matches myGCN.reset_parameters."""
    params = []
    for i in range(len(nhid_list) - 1):
        f_in, f_out = nhid_list[i], nhid_list[i + 1]
        key, sub = jax.random.split(key)
        stdv = (6.0 / (f_in + f_out)) ** 0.5
        w = jax.random.uniform(sub, (f_in, f_out), jnp.float32, -stdv, stdv)
        b = jnp.zeros((f_out,), jnp.float32)
        params.append((w, b))
    return params


def homograph_forward(params, x, edge_index, edge_weight=None, if_catout=False):
    n = x.shape[0]
    n_pad, tm, tk = _pick_tiles(n)

    # cached=True in myGCN -> A_norm is shared by every layer of this call.
    a = build_norm_adj(edge_index, n, edge_weight)
    a = jnp.pad(a, ((0, n_pad - n), (0, n_pad - n))).astype(jnp.bfloat16)

    outs = [x]
    h = x
    for (w, b) in params:
        # conv + F.relu (the reference applies relu after every layer,
        # including the last, and before the optional concatenation).
        h = gcn_layer(a, h, w, b, n=n, n_pad=n_pad, tm=tm, tk=tk)
        outs.append(h)
    if if_catout:
        return jnp.concatenate(outs, axis=1)
    return h


def reference_forward(params, x, edge_index, edge_weight=None, if_catout=False):
    """Pure-JAX f32 reference (same math as homoGraph.forward)."""
    n = x.shape[0]
    a = build_norm_adj(edge_index, n, edge_weight)
    outs = [x]
    h = x
    for (w, b) in params:
        h = jnp.maximum(a @ (h @ w) + b[None, :], 0.0)
        outs.append(h)
    return jnp.concatenate(outs, axis=1) if if_catout else h


# TODO(synk): multi_relational=True path (myRGCN: per-relation basis weights,
# mean aggregation over edge_type ranges) and the start_graph learned embedding
# are not exercised here; only the homogeneous GCN stack is implemented.
# TODO(synk): for large sparse graphs, replace the dense A_norm stream with a
# block-sparse SpMM via PrefetchScalarGridSpec (skip empty (tm, tk) A blocks).


if __name__ == "__main__":
    key = jax.random.PRNGKey(0)

    num_nodes = 32
    num_edges = 64
    nhid_list = [16, 32, 16]  # 2 GCN layers

    k_x, k_row, k_col, k_p = jax.random.split(key, 4)
    x = jax.random.normal(k_x, (num_nodes, nhid_list[0]), jnp.float32)
    row = jax.random.randint(k_row, (num_edges,), 0, num_nodes, jnp.int32)
    col = jax.random.randint(k_col, (num_edges,), 0, num_nodes, jnp.int32)
    edge_index = jnp.stack([row, col], axis=0)

    params = init_homograph_params(k_p, nhid_list)

    fwd = jax.jit(functools.partial(homograph_forward, params))
    out = fwd(x, edge_index)
    jax.block_until_ready(out)

    fwd_cat = jax.jit(functools.partial(homograph_forward, params, if_catout=True))
    out_cat = fwd_cat(x, edge_index)
    jax.block_until_ready(out_cat)

    # checks: shapes, final ReLU, and agreement with the f32 reference
    # (tolerance sized for bf16 A / XW streaming with f32 accumulation).
    ref = reference_forward(params, x, edge_index)
    assert out.shape == (num_nodes, nhid_list[-1])
    assert out_cat.shape == (num_nodes, sum(nhid_list))
    assert bool(jnp.all(out >= 0.0))
    assert bool(jnp.all(jnp.isfinite(out)))
    assert bool(jnp.max(jnp.abs(out - ref)) < 5e-2)

    print("KERNEL_OK")
</pallas_src>

<mosaic_0001>
module attributes {stable_mosaic.version = 11 : i64} {
  func.func private @main(%arg0: i32) attributes {dimension_semantics = [#tpu.dimension_semantics<core_parallel>], iteration_bounds = array<i64: 2>, tpu.core_type = #tpu.core_type<sc_scalar_subcore>, window_params = []} {
    return
  }
}

module attributes {stable_mosaic.version = 11 : i64} {
  func.func private @main(%arg0: i32) attributes {dimension_semantics = [#tpu.dimension_semantics<core_parallel>], iteration_bounds = array<i64: 2>, tpu.core_type = #tpu.core_type<sc_scalar_subcore>, window_params = []} {
    return
  }
}

module attributes {stable_mosaic.version = 11 : i64} {
  func.func @_feature_transform_kernel(%arg0: i32, %arg1: memref<128x128xf32, #tpu.memory_space<vmem>>, %arg2: memref<128x128xf32, #tpu.memory_space<vmem>>, %arg3: memref<128x128xbf16, #tpu.memory_space<vmem>>) attributes {dimension_semantics = [#tpu.dimension_semantics<parallel>], iteration_bounds = array<i64: 1>, scalar_prefetch = 0 : i64, scratch_operands = 0 : i64, tpu.core_type = #tpu.core_type<tc>, window_params = [{transform_indices = @transform_0, window_bounds = array<i64: 128, 128>}, {pipeline_mode = #tpu.pipeline_mode<synchronous>, transform_indices = @transform_1, window_bounds = array<i64: 128, 128>}, {transform_indices = @transform_2, window_bounds = array<i64: 128, 128>}]} {
    %c0 = arith.constant 0 : index
    %c0_0 = arith.constant 0 : index
    %0 = vector.load %arg1[%c0, %c0_0] : memref<128x128xf32, #tpu.memory_space<vmem>>, vector<128x128xf32>
    %c0_1 = arith.constant 0 : index
    %c0_2 = arith.constant 0 : index
    %1 = vector.load %arg2[%c0_1, %c0_2] : memref<128x128xf32, #tpu.memory_space<vmem>>, vector<128x128xf32>
    %cst = arith.constant dense<0.000000e+00> : vector<128x128xf32>
    %2 = tpu.matmul %0, %1, %cst {dimension_numbers = #tpu.dot_dimension_numbers<[1], [0], [0], [1], [0, 0, 1, 1], [], []>} : vector<128x128xf32>, vector<128x128xf32>, vector<128x128xf32> -> vector<128x128xf32>
    %3 = arith.truncf %2 : vector<128x128xf32> to vector<128x128xbf16>
    %c0_3 = arith.constant 0 : index
    %c0_4 = arith.constant 0 : index
    %4 = vector.load %arg3[%c0_3, %c0_4] : memref<128x128xbf16, #tpu.memory_space<vmem>>, vector<128x128xbf16>
    tpu.vector_store %arg3[%c0_3, %c0_4], %3 {strides = array<i32>} : memref<128x128xbf16, #tpu.memory_space<vmem>>, vector<128x128xbf16>,
    return
  }
  func.func @transform_0(%arg0: i32) -> (i32, i32) {
    %c0_i32 = arith.constant 0 : i32
    %c0_i32_0 = arith.constant 0 : i32
    return %arg0, %c0_i32 : i32, i32
  }
  func.func @transform_1(%arg0: i32) -> (i32, i32) {
    %c0_i32 = arith.constant 0 : i32
    %c0_i32_0 = arith.constant 0 : i32
    %c0_i32_1 = arith.constant 0 : i32
    return %c0_i32, %c0_i32_0 : i32, i32
  }
  func.func @transform_2(%arg0: i32) -> (i32, i32) {
    %c0_i32 = arith.constant 0 : i32
    %c0_i32_0 = arith.constant 0 : i32
    return %arg0, %c0_i32 : i32, i32
  }
}

module attributes {stable_mosaic.version = 11 : i64} {
  func.func @_aggregate_kernel(%arg0: i32, %arg1: i32, %arg2: memref<128x128xbf16, #tpu.memory_space<vmem>>, %arg3: memref<128x128xbf16, #tpu.memory_space<vmem>>, %arg4: memref<1x128xf32, #tpu.memory_space<vmem>>, %arg5: memref<128x128xf32, #tpu.memory_space<vmem>>, %arg6: memref<128x128xf32, #tpu.memory_space<vmem>>) attributes {dimension_semantics = [#tpu.dimension_semantics<parallel>, #tpu.dimension_semantics<arbitrary>], iteration_bounds = array<i64: 1, 1>, scalar_prefetch = 0 : i64, scratch_operands = 1 : i64, tpu.core_type = #tpu.core_type<tc>, window_params = [{transform_indices = @transform_0, window_bounds = array<i64: 128, 128>}, {transform_indices = @transform_1, window_bounds = array<i64: 128, 128>}, {pipeline_mode = #tpu.pipeline_mode<synchronous>, transform_indices = @transform_2, window_bounds = array<i64: 1, 128>}, {transform_indices = @transform_3, window_bounds = array<i64: 128, 128>}]} {
    %c0_i32 = arith.constant 0 : i32
    %0 = arith.cmpi eq, %arg1, %c0_i32 : i32
    %1 = arith.extui %0 : i1 to i32
    %c0_i32_0 = arith.constant 0 : i32
    %2 = arith.cmpi ne, %1, %c0_i32_0 : i32
    scf.if %2 {
      %cst_10 = arith.constant 0.000000e+00 : f32
      %12 = vector.broadcast %cst_10 : f32 to vector<128x128xf32>
      %c0_11 = arith.constant 0 : index
      %c0_12 = arith.constant 0 : index
      %13 = vector.load %arg6[%c0_11, %c0_12] : memref<128x128xf32, #tpu.memory_space<vmem>>, vector<128x128xf32>
      tpu.vector_store %arg6[%c0_11, %c0_12], %12 {strides = array<i32>} : memref<128x128xf32, #tpu.memory_space<vmem>>, vector<128x128xf32>,
    } else {
    }
    %c0 = arith.constant 0 : index
    %c0_1 = arith.constant 0 : index
    %3 = vector.load %arg6[%c0, %c0_1] : memref<128x128xf32, #tpu.memory_space<vmem>>, vector<128x128xf32>
    %c0_2 = arith.constant 0 : index
    %c0_3 = arith.constant 0 : index
    %4 = vector.load %arg2[%c0_2, %c0_3] : memref<128x128xbf16, #tpu.memory_space<vmem>>, vector<128x128xbf16>
    %c0_4 = arith.constant 0 : index
    %c0_5 = arith.constant 0 : index
    %5 = vector.load %arg3[%c0_4, %c0_5] : memref<128x128xbf16, #tpu.memory_space<vmem>>, vector<128x128xbf16>
    %cst = arith.constant dense<0.000000e+00> : vector<128x128xf32>
    %6 = tpu.matmul %4, %5, %cst {dimension_numbers = #tpu.dot_dimension_numbers<[1], [0], [0], [1], [0, 0, 1, 1], [], []>} : vector<128x128xbf16>, vector<128x128xbf16>, vector<128x128xf32> -> vector<128x128xf32>
    %7 = arith.addf %3, %6 : vector<128x128xf32>
    %c0_6 = arith.constant 0 : index
    %c0_7 = arith.constant 0 : index
    %8 = vector.load %arg6[%c0_6, %c0_7] : memref<128x128xf32, #tpu.memory_space<vmem>>, vector<128x128xf32>
    tpu.vector_store %arg6[%c0_6, %c0_7], %7 {strides = array<i32>} : memref<128x128xf32, #tpu.memory_space<vmem>>, vector<128x128xf32>,
    %c0_i32_8 = arith.constant 0 : i32
    %9 = arith.cmpi eq, %arg1, %c0_i32_8 : i32
    %10 = arith.extui %9 : i1 to i32
    %c0_i32_9 = arith.constant 0 : i32
    %11 = arith.cmpi ne, %10, %c0_i32_9 : i32
    scf.if %11 {
      %c0_10 = arith.constant 0 : index
      %c0_11 = arith.constant 0 : index
      %12 = vector.load %arg6[%c0_10, %c0_11] : memref<128x128xf32, #tpu.memory_space<vmem>>, vector<128x128xf32>
      %c0_12 = arith.constant 0 : index
      %c0_13 = arith.constant 0 : index
      %13 = vector.load %arg4[%c0_12, %c0_13] : memref<1x128xf32, #tpu.memory_space<vmem>>, vector<1x128xf32>
      %14 = vector.broadcast %13 : vector<1x128xf32> to vector<128x128xf32>
      %15 = arith.addf %12, %14 : vector<128x128xf32>
      %cst_14 = arith.constant 0.000000e+00 : f32
      %16 = vector.broadcast %cst_14 : f32 to vector<128x128xf32>
      %17 = arith.maximumf %15, %16 : vector<128x128xf32>
      %c0_15 = arith.constant 0 : index
      %c0_16 = arith.constant 0 : index
      %18 = vector.load %arg5[%c0_15, %c0_16] : memref<128x128xf32, #tpu.memory_space<vmem>>, vector<128x128xf32>
      tpu.vector_store %arg5[%c0_15, %c0_16], %17 {strides = array<i32>} : memref<128x128xf32, #tpu.memory_space<vmem>>, vector<128x128xf32>,
    } else {
    }
    return
  }
  func.func @transform_0(%arg0: i32, %arg1: i32) -> (i32, i32) {
    %c0_i32 = arith.constant 0 : i32
    return %arg0, %arg1 : i32, i32
  }
  func.func @transform_1(%arg0: i32, %arg1: i32) -> (i32, i32) {
    %c0_i32 = arith.constant 0 : i32
    %c0_i32_0 = arith.constant 0 : i32
    return %arg1, %c0_i32 : i32, i32
  }
  func.func @transform_2(%arg0: i32, %arg1: i32) -> (i32, i32) {
    %c0_i32 = arith.constant 0 : i32
    %c0_i32_0 = arith.constant 0 : i32
    %c0_i32_1 = arith.constant 0 : i32
    return %c0_i32, %c0_i32_0 : i32, i32
  }
  func.func @transform_3(%arg0: i32, %arg1: i32) -> (i32, i32) {
    %c0_i32 = arith.constant 0 : i32
    %c0_i32_0 = arith.constant 0 : i32
    return %arg0, %c0_i32 : i32, i32
  }
}

</mosaic_0001>

<llo_original>
// kernel: homograph_forward.4
$region0: #{homograph_forward.4}
  #allocation0 [shape = 'u32[]', space=smem, size = 0x4, offset = 0x4, fixed_abs, tag = 'smem constant byte address 0x4 - core index']
  #allocation1 [shape = 'u32[144,128]{1,0:T(1,128)}', space=vmem, size = 0x12000, scoped, tag = 'internal scratch']
  %s0 = inlined_call_operand.vmem [shape: f32[128,128], index: 0, kind: input, shape index: {}]
  %s1 = inlined_call_operand.vmem [shape: f32[128,128], index: 1, kind: input, shape index: {}]
  %s2 = inlined_call_operand.vmem [shape: bf16[128,128], index: 2, kind: output, shape index: {}]
  %s3 = sld [smem:[#allocation0]]
  $region18: #{homograph_forward.4} parent=0
    _
  %s5 = ssub.s32 1, %s3
  %s6 = scalar_select 0, %s5, %s3
  // Predicated region
  $region2: #{homograph_forward.4} parent=0 // pred_check
    _
  $region3: #{homograph_forward.4} parent=0 // pred_check_branch
    %8 = sbr.rel (0) target = $region5
  $region4: #{homograph_forward.4} parent=0 // pred_region
    _
  $region5: #{homograph_forward.4} parent=0 // pred_fallthru
    _
  // Predicated region
  $region6: #{homograph_forward.4} parent=0 // pred_check
    _
  $region7: #{homograph_forward.4} parent=0 // pred_check_branch
    %10 = sbr.rel (0) target = $region9
  $region8: #{homograph_forward.4} parent=0 // pred_region
    _
  $region9: #{homograph_forward.4} parent=0 // pred_fallthru
    _
  %v11 = vld [vmem:[%s0] sm:$0xff]
  %v12 = vld [vmem:[%s0 + $0x8] sm:$0xff]
  %v13 = vld [vmem:[%s0 + $0x10] sm:$0xff]
  %v14 = vld [vmem:[%s0 + $0x18] sm:$0xff]
  %v15 = vld [vmem:[%s0 + $0x20] sm:$0xff]
  %v16 = vld [vmem:[%s0 + $0x28] sm:$0xff]
  %v17 = vld [vmem:[%s0 + $0x30] sm:$0xff]
  %v18 = vld [vmem:[%s0 + $0x38] sm:$0xff]
  %v19 = vld [vmem:[%s0 + $0x40] sm:$0xff]
  %v20 = vld [vmem:[%s0 + $0x48] sm:$0xff]
  %v21 = vld [vmem:[%s0 + $0x50] sm:$0xff]
  %v22 = vld [vmem:[%s0 + $0x58] sm:$0xff]
  %v23 = vld [vmem:[%s0 + $0x60] sm:$0xff]
  %v24 = vld [vmem:[%s0 + $0x68] sm:$0xff]
  %v25 = vld [vmem:[%s0 + $0x70] sm:$0xff]
  %v26 = vld [vmem:[%s0 + $0x78] sm:$0xff]
  %v27 = vld [vmem:[%s1] sm:$0xff]
  %v28 = vld [vmem:[%s1 + $0x8] sm:$0xff]
  %v29 = vld [vmem:[%s1 + $0x10] sm:$0xff]
  %v30 = vld [vmem:[%s1 + $0x18] sm:$0xff]
  %v31 = vld [vmem:[%s1 + $0x20] sm:$0xff]
  %v32 = vld [vmem:[%s1 + $0x28] sm:$0xff]
  %v33 = vld [vmem:[%s1 + $0x30] sm:$0xff]
  %v34 = vld [vmem:[%s1 + $0x38] sm:$0xff]
  %v35 = vld [vmem:[%s1 + $0x40] sm:$0xff]
  %v36 = vld [vmem:[%s1 + $0x48] sm:$0xff]
  %v37 = vld [vmem:[%s1 + $0x50] sm:$0xff]
  %v38 = vld [vmem:[%s1 + $0x58] sm:$0xff]
  %v39 = vld [vmem:[%s1 + $0x60] sm:$0xff]
  %v40 = vld [vmem:[%s1 + $0x68] sm:$0xff]
  %v41 = vld [vmem:[%s1 + $0x70] sm:$0xff]
  %v42 = vld [vmem:[%s1 + $0x78] sm:$0xff]
  %43 = vmatprep.subr.mxu0 0.0
  %44 = vmatpush1.msra.mxu0 %v27
  %45 = vmatprep.subr.mxu0 0.0
  %46 = vmatpush1.msra.mxu0 %v28
  %47 = vmatprep.subr.mxu0 0.0
  %48 = vmatpush1.msra.mxu0 %v29
  %49 = vmatprep.subr.mxu0 0.0
  %50 = vmatpush1.msra.mxu0 %v30
  %51 = vmatprep.subr.mxu0 0.0
  %52 = vmatpush1.msra.mxu0 %v31
  %53 = vmatprep.subr.mxu0 0.0
  %54 = vmatpush1.msra.mxu0 %v32
  %55 = vmatprep.subr.mxu0 0.0
  %56 = vmatpush1.msra.mxu0 %v33
  %57 = vmatprep.subr.mxu0 0.0
  %58 = vmatpush1.msra.mxu0 %v34
  %59 = vmatprep.subr.mxu0 0.0
  %60 = vmatpush1.msra.mxu0 %v35
  %61 = vmatprep.subr.mxu0 0.0
  %62 = vmatpush1.msra.mxu0 %v36
  %63 = vmatprep.subr.mxu0 0.0
  %64 = vmatpush1.msra.mxu0 %v37
  %65 = vmatprep.subr.mxu0 0.0
  %66 = vmatpush1.msra.mxu0 %v38
  %67 = vmatprep.subr.mxu0 0.0
  %68 = vmatpush1.msra.mxu0 %v39
  %69 = vmatprep.subr.mxu0 0.0
  %70 = vmatpush1.msra.mxu0 %v40
  %71 = vmatprep.subr.mxu0 0.0
  %72 = vmatpush1.msra.mxu0 %v41
  %73 = vmatprep.subr.mxu0 0.0
  %74 = vmatpush1.msra.mxu0 %v42
  %75 = vmatprep.subr.mxu0 0.0
  %76 = vmatpush1.msra.mxu0 0.0
  %77 = vmatprep.subr.mxu0 0.0
  %78 = vmatpush1.msra.mxu0 0.0
  %79 = vmatprep.subr.mxu0 0.0
  %80 = vmatpush1.msra.mxu0 0.0
  %81 = vmatprep.subr.mxu0 0.0
  %82 = vmatpush1.msra.mxu0 0.0
  %83 = vmatprep.subr.mxu0 0.0
  %84 = vmatpush1.msra.mxu0 0.0
  %85 = vmatprep.subr.mxu0 0.0
  %86 = vmatpush1.msra.mxu0 0.0
  %87 = vmatprep.subr.mxu0 0.0
  %88 = vmatpush1.msra.mxu0 0.0
  %89 = vmatprep.subr.mxu0 0.0
  %90 = vmatpush1.msra.mxu0 0.0
  %91 = vmatprep.subr.mxu0 0.0
  %92 = vmatpush1.msra.mxu0 0.0
  %93 = vmatprep.subr.mxu0 0.0
  %94 = vmatpush1.msra.mxu0 0.0
  %95 = vmatprep.subr.mxu0 0.0
  %96 = vmatpush1.msra.mxu0 0.0
  %97 = vmatprep.subr.mxu0 0.0
  %98 = vmatpush1.msra.mxu0 0.0
  %99 = vmatprep.subr.mxu0 0.0
  %100 = vmatpush1.msra.mxu0 0.0
  %101 = vmatprep.subr.mxu0 0.0
  %102 = vmatpush1.msra.mxu0 0.0
  %103 = vmatprep.subr.mxu0 0.0
  %104 = vmatpush1.msra.mxu0 0.0
  %105 = vmatprep.subr.mxu0 0.0
  %106 = vmatpush1.msra.mxu0 0.0
  %107 = vmatprep.mubr.f32.mxu0 0.0
  %108 = vmatmul.mubr.f32.gmra.mrb[0].mxu0 %v11
  %v109 = vpop.f32.mrb[0].mxu0
  %v110 = vadd.f32 0.0, %v109
  %v111 = vpop.f32.mrb[0].mxu0
  %112 = vmatprep.mubr.f32.mxu0 0.0
  %113 = vmatmul.mubr.f32.gmra.mrb[0].mxu0 %v12
  %v114 = vpop.f32.mrb[0].mxu0
  %v115 = vadd.f32 0.0, %v114
  %v116 = vpop.f32.mrb[0].mxu0
  %117 = vmatprep.mubr.f32.mxu0 0.0
  %118 = vmatmul.mubr.f32.gmra.mrb[0].mxu0 %v13
  %v119 = vpop.f32.mrb[0].mxu0
  %v120 = vadd.f32 0.0, %v119
  %v121 = vpop.f32.mrb[0].mxu0
  %122 = vmatprep.mubr.f32.mxu0 0.0
  %123 = vmatmul.mubr.f32.gmra.mrb[0].mxu0 %v14
  %v124 = vpop.f32.mrb[0].mxu0
  %v125 = vadd.f32 0.0, %v124
  %v126 = vpop.f32.mrb[0].mxu0
  %127 = vmatprep.mubr.f32.mxu0 0.0
  %128 = vmatmul.mubr.f32.gmra.mrb[0].mxu0 %v15
  %v129 = vpop.f32.mrb[0].mxu0
  %v130 = vadd.f32 0.0, %v129
  %v131 = vpop.f32.mrb[0].mxu0
  %132 = vmatprep.mubr.f32.mxu0 0.0
  %133 = vmatmul.mubr.f32.gmra.mrb[0].mxu0 %v16
  %v134 = vpop.f32.mrb[0].mxu0
  %v135 = vadd.f32 0.0, %v134
  %v136 = vpop.f32.mrb[0].mxu0
  %137 = vmatprep.mubr.f32.mxu0 0.0
  %138 = vmatmul.mubr.f32.gmra.mrb[0].mxu0 %v17
  %v139 = vpop.f32.mrb[0].mxu0
  %v140 = vadd.f32 0.0, %v139
  %v141 = vpop.f32.mrb[0].mxu0
  %142 = vmatprep.mubr.f32.mxu0 0.0
  %143 = vmatmul.mubr.f32.gmra.mrb[0].mxu0 %v18
  %v144 = vpop.f32.mrb[0].mxu0
  %v145 = vadd.f32 0.0, %v144
  %v146 = vpop.f32.mrb[0].mxu0
  %147 = vmatprep.mubr.f32.mxu0 0.0
  %148 = vmatmul.mubr.f32.gmra.mrb[0].mxu0 %v19
  %v149 = vpop.f32.mrb[0].mxu0
  %v150 = vadd.f32 0.0, %v149
  %v151 = vpop.f32.mrb[0].mxu0
  %152 = vmatprep.mubr.f32.mxu0 0.0
  %153 = vmatmul.mubr.f32.gmra.mrb[0].mxu0 %v20
  %v154 = vpop.f32.mrb[0].mxu0
  %v155 = vadd.f32 0.0, %v154
  %v156 = vpop.f32.mrb[0].mxu0
  %157 = vmatprep.mubr.f32.mxu0 0.0
  %158 = vmatmul.mubr.f32.gmra.mrb[0].mxu0 %v21
  %v159 = vpop.f32.mrb[0].mxu0
  %v160 = vadd.f32 0.0, %v159
  %v161 = vpop.f32.mrb[0].mxu0
  %162 = vmatprep.mubr.f32.mxu0 0.0
  %163 = vmatmul.mubr.f32.gmra.mrb[0].mxu0 %v22
  %v164 = vpop.f32.mrb[0].mxu0
  %v165 = vadd.f32 0.0, %v164
  %v166 = vpop.f32.mrb[0].mxu0
  %167 = vmatprep.mubr.f32.mxu0 0.0
  %168 = vmatmul.mubr.f32.gmra.mrb[0].mxu0 %v23
  %v169 = vpop.f32.mrb[0].mxu0
  %v170 = vadd.f32 0.0, %v169
  %v171 = vpop.f32.mrb[0].mxu0
  %172 = vmatprep.mubr.f32.mxu0 0.0
  %173 = vmatmul.mubr.f32.gmra.mrb[0].mxu0 %v24
  %v174 = vpop.f32.mrb[0].mxu0
  %v175 = vadd.f32 0.0, %v174
  %v176 = vpop.f32.mrb[0].mxu0
  %177 = vmatprep.mubr.f32.mxu0 0.0
  %178 = vmatmul.mubr.f32.gmra.mrb[0].mxu0 %v25
  %v179 = vpop.f32.mrb[0].mxu0
  %v180 = vadd.f32 0.0, %v179
  %v181 = vpop.f32.mrb[0].mxu0
  %182 = vmatprep.mubr.f32.mxu0 0.0
  %183 = vmatmul.mubr.f32.gmra.mrb[0].mxu0 %v26
  %v184 = vpop.f32.mrb[0].mxu0
  %v185 = vadd.f32 0.0, %v184
  %v186 = vpop.f32.mrb[0].mxu0
  %187 = vdwg.mxu0
  %v188 = vpack.c.bf16 %v115, %v110
  %v189 = vpack.c.bf16 %v125, %v120
  %v190 = vpack.c.bf16 %v135, %v130
  %v191 = vpack.c.bf16 %v145, %v140
  %v192 = vpack.c.bf16 %v155, %v150
  %v193 = vpack.c.bf16 %v165, %v160
  %v194 = vpack.c.bf16 %v175, %v170
  %v195 = vpack.c.bf16 %v185, %v180
  %v204 = vunpack.c.l.b16 %v188
  %v205 = vunpack.c.h.b16 %v188
  %v206 = vunpack.c.l.b16 %v189
  %v207 = vunpack.c.h.b16 %v189
  %v208 = vunpack.c.l.b16 %v190
  %v209 = vunpack.c.h.b16 %v190
  %v210 = vunpack.c.l.b16 %v191
  %v211 = vunpack.c.h.b16 %v191
  %v212 = vunpack.c.l.b16 %v192
  %v213 = vunpack.c.h.b16 %v192
  %v214 = vunpack.c.l.b16 %v193
  %v215 = vunpack.c.h.b16 %v193
  %v216 = vunpack.c.l.b16 %v194
  %v217 = vunpack.c.h.b16 %v194
  %v218 = vunpack.c.l.b16 %v195
  %v219 = vunpack.c.h.b16 %v195
  %v220 = vpack.c.b16 %v204, %v204
  %v221 = vpack.c.b16 %v205, %v205
  %v222 = vpack.c.b16 %v206, %v206
  %v223 = vpack.c.b16 %v207, %v207
  %v224 = vpack.c.b16 %v208, %v208
  %v225 = vpack.c.b16 %v209, %v209
  %v226 = vpack.c.b16 %v210, %v210
  %v227 = vpack.c.b16 %v211, %v211
  %v228 = vpack.c.b16 %v212, %v212
  %v229 = vpack.c.b16 %v213, %v213
  %v230 = vpack.c.b16 %v214, %v214
  %v231 = vpack.c.b16 %v215, %v215
  %v232 = vpack.c.b16 %v216, %v216
  %v233 = vpack.c.b16 %v217, %v217
  %v234 = vpack.c.b16 %v218, %v218
  %v235 = vpack.c.b16 %v219, %v219
  %252 = vst [vmem:[%s2] sm:$0xf] %v220
  %253 = vst [vmem:[%s2 + $0x4] sm:$0xf] %v221
  %254 = vst [vmem:[%s2 + $0x8] sm:$0xf] %v222
  %255 = vst [vmem:[%s2 + $0xc] sm:$0xf] %v223
  %256 = vst [vmem:[%s2 + $0x10] sm:$0xf] %v224
  %257 = vst [vmem:[%s2 + $0x14] sm:$0xf] %v225
  %258 = vst [vmem:[%s2 + $0x18] sm:$0xf] %v226
  %259 = vst [vmem:[%s2 + $0x1c] sm:$0xf] %v227
  %260 = vst [vmem:[%s2 + $0x20] sm:$0xf] %v228
  %261 = vst [vmem:[%s2 + $0x24] sm:$0xf] %v229
  %262 = vst [vmem:[%s2 + $0x28] sm:$0xf] %v230
  %263 = vst [vmem:[%s2 + $0x2c] sm:$0xf] %v231
  %264 = vst [vmem:[%s2 + $0x30] sm:$0xf] %v232
  %265 = vst [vmem:[%s2 + $0x34] sm:$0xf] %v233
  %266 = vst [vmem:[%s2 + $0x38] sm:$0xf] %v234
  %267 = vst [vmem:[%s2 + $0x3c] sm:$0xf] %v235
  // Predicated region
  $region10: #{homograph_forward.4} parent=0 // pred_check
    _
  $region11: #{homograph_forward.4} parent=0 // pred_check_branch
    %269 = sbr.rel (0) target = $region13
  $region12: #{homograph_forward.4} parent=0 // pred_region
    _
  $region13: #{homograph_forward.4} parent=0 // pred_fallthru
    _
  // Predicated region
  $region14: #{homograph_forward.4} parent=0 // pred_check
    _
  $region15: #{homograph_forward.4} parent=0 // pred_check_branch
    %271 = sbr.rel (0) target = $region17
  $region16: #{homograph_forward.4} parent=0 // pred_region
    _
  $region17: #{homograph_forward.4} parent=0 // pred_fallthru
    _

// kernel: homograph_forward.5
$region0: #{homograph_forward.5}
  #allocation0 [shape = 'u32[]', space=smem, size = 0x4, offset = 0x4, fixed_abs, tag = 'smem constant byte address 0x4 - core index']
  #allocation1 [shape = 'u32[144,128]{1,0:T(1,128)}', space=vmem, size = 0x12000, scoped, tag = 'internal scratch']
  #allocation2 [shape = 'f32[128,128]{1,0:T(8,128)}', space=vmem, size = 0x10000, scoped, tag = 'scratch operand']
  %s0 = inlined_call_operand.vmem [shape: bf16[128,128], index: 0, kind: input, shape index: {}]
  %s1 = inlined_call_operand.vmem [shape: bf16[128,128], index: 1, kind: input, shape index: {}]
  %s2 = inlined_call_operand.vmem [shape: f32[1,128], index: 2, kind: input, shape index: {}]
  %s3 = inlined_call_operand.vmem [shape: f32[128,128], index: 3, kind: output, shape index: {}]
  %s4 = sld [smem:[#allocation0]]
  $region30: #{homograph_forward.5} parent=0
    _
  %s6 = ssub.s32 1, %s4
  %s7 = scalar_select 0, %s6, %s4
  // Predicated region
  $region2: #{homograph_forward.5} parent=0 // pred_check
    _
  $region3: #{homograph_forward.5} parent=0 // pred_check_branch
    %9 = sbr.rel (0) target = $region5
  $region4: #{homograph_forward.5} parent=0 // pred_region
    _
  $region5: #{homograph_forward.5} parent=0 // pred_fallthru
    _
  // Predicated region
  $region6: #{homograph_forward.5} parent=0 // pred_check
    _
  $region7: #{homograph_forward.5} parent=0 // pred_check_branch
    %11 = sbr.rel (0) target = $region9
  $region8: #{homograph_forward.5} parent=0 // pred_region
    _
  $region9: #{homograph_forward.5} parent=0 // pred_fallthru
    _
  // Predicated region
  $region10: #{homograph_forward.5} parent=0 // pred_check
    _
  $region11: #{homograph_forward.5} parent=0 // pred_check_branch
    %13 = sbr.rel (0) target = $region13
  $region12: #{homograph_forward.5} parent=0 // pred_region
    _
  $region13: #{homograph_forward.5} parent=0 // pred_fallthru
    _
  %p15 = scmp.eq.s32.totalorder 0, 0
  // Predicated region
  $region14: #{homograph_forward.5} parent=0 // pred_check
    %p16 = pneg %p15
  $region15: #{homograph_forward.5} parent=0 // pred_check_branch
    %18 = sbr.rel (%p16) target = $region17
  $region16: #{homograph_forward.5} parent=0 // pred_region
    %19 = vst [vmem:[#allocation2] sm:$0xff] 0.0
    %20 = vst [vmem:[#allocation2 + $0x8] sm:$0xff] 0.0
    %21 = vst [vmem:[#allocation2 + $0x10] sm:$0xff] 0.0
    %22 = vst [vmem:[#allocation2 + $0x18] sm:$0xff] 0.0
    %23 = vst [vmem:[#allocation2 + $0x20] sm:$0xff] 0.0
    %24 = vst [vmem:[#allocation2 + $0x28] sm:$0xff] 0.0
    %25 = vst [vmem:[#allocation2 + $0x30] sm:$0xff] 0.0
    %26 = vst [vmem:[#allocation2 + $0x38] sm:$0xff] 0.0
    %27 = vst [vmem:[#allocation2 + $0x40] sm:$0xff] 0.0
    %28 = vst [vmem:[#allocation2 + $0x48] sm:$0xff] 0.0
    %29 = vst [vmem:[#allocation2 + $0x50] sm:$0xff] 0.0
    %30 = vst [vmem:[#allocation2 + $0x58] sm:$0xff] 0.0
    %31 = vst [vmem:[#allocation2 + $0x60] sm:$0xff] 0.0
    %32 = vst [vmem:[#allocation2 + $0x68] sm:$0xff] 0.0
    %33 = vst [vmem:[#allocation2 + $0x70] sm:$0xff] 0.0
    %34 = vst [vmem:[#allocation2 + $0x78] sm:$0xff] 0.0
  $region17: #{homograph_forward.5} parent=0 // pred_fallthru
    _
  %v35 = vld [vmem:[#allocation2] sm:$0xff]
  %v36 = vld [vmem:[#allocation2 + $0x8] sm:$0xff]
  %v37 = vld [vmem:[#allocation2 + $0x10] sm:$0xff]
  %v38 = vld [vmem:[#allocation2 + $0x18] sm:$0xff]
  %v39 = vld [vmem:[#allocation2 + $0x20] sm:$0xff]
  %v40 = vld [vmem:[#allocation2 + $0x28] sm:$0xff]
  %v41 = vld [vmem:[#allocation2 + $0x30] sm:$0xff]
  %v42 = vld [vmem:[#allocation2 + $0x38] sm:$0xff]
  %v43 = vld [vmem:[#allocation2 + $0x40] sm:$0xff]
  %v44 = vld [vmem:[#allocation2 + $0x48] sm:$0xff]
  %v45 = vld [vmem:[#allocation2 + $0x50] sm:$0xff]
  %v46 = vld [vmem:[#allocation2 + $0x58] sm:$0xff]
  %v47 = vld [vmem:[#allocation2 + $0x60] sm:$0xff]
  %v48 = vld [vmem:[#allocation2 + $0x68] sm:$0xff]
  %v49 = vld [vmem:[#allocation2 + $0x70] sm:$0xff]
  %v50 = vld [vmem:[#allocation2 + $0x78] sm:$0xff]
  %v51 = vld [vmem:[%s0] sm:$0xf]
  %v52 = vld [vmem:[%s0 + $0x4] sm:$0xf]
  %v53 = vld [vmem:[%s0 + $0x8] sm:$0xf]
  %v54 = vld [vmem:[%s0 + $0xc] sm:$0xf]
  %v55 = vld [vmem:[%s0 + $0x10] sm:$0xf]
  %v56 = vld [vmem:[%s0 + $0x14] sm:$0xf]
  %v57 = vld [vmem:[%s0 + $0x18] sm:$0xf]
  %v58 = vld [vmem:[%s0 + $0x1c] sm:$0xf]
  %v59 = vld [vmem:[%s0 + $0x20] sm:$0xf]
  %v60 = vld [vmem:[%s0 + $0x24] sm:$0xf]
  %v61 = vld [vmem:[%s0 + $0x28] sm:$0xf]
  %v62 = vld [vmem:[%s0 + $0x2c] sm:$0xf]
  %v63 = vld [vmem:[%s0 + $0x30] sm:$0xf]
  %v64 = vld [vmem:[%s0 + $0x34] sm:$0xf]
  %v65 = vld [vmem:[%s0 + $0x38] sm:$0xf]
  %v66 = vld [vmem:[%s0 + $0x3c] sm:$0xf]
  %v67 = vld [vmem:[%s1] sm:$0xf]
  %v68 = vld [vmem:[%s1 + $0x4] sm:$0xf]
  %v69 = vld [vmem:[%s1 + $0x8] sm:$0xf]
  %v70 = vld [vmem:[%s1 + $0xc] sm:$0xf]
  %v71 = vld [vmem:[%s1 + $0x10] sm:$0xf]
  %v72 = vld [vmem:[%s1 + $0x14] sm:$0xf]
  %v73 = vld [vmem:[%s1 + $0x18] sm:$0xf]
  %v74 = vld [vmem:[%s1 + $0x1c] sm:$0xf]
  %v75 = vld [vmem:[%s1 + $0x20] sm:$0xf]
  %v76 = vld [vmem:[%s1 + $0x24] sm:$0xf]
  %v77 = vld [vmem:[%s1 + $0x28] sm:$0xf]
  %v78 = vld [vmem:[%s1 + $0x2c] sm:$0xf]
  %v79 = vld [vmem:[%s1 + $0x30] sm:$0xf]
  %v80 = vld [vmem:[%s1 + $0x34] sm:$0xf]
  %v81 = vld [vmem:[%s1 + $0x38] sm:$0xf]
  %v82 = vld [vmem:[%s1 + $0x3c] sm:$0xf]
  %v99 = vunpack.c.l.b16 %v51
  %v100 = vunpack.c.l.b16 %v52
  %v101 = vunpack.c.l.b16 %v53
  %v102 = vunpack.c.l.b16 %v54
  %v103 = vunpack.c.l.b16 %v55
  %v104 = vunpack.c.l.b16 %v56
  %v105 = vunpack.c.l.b16 %v57
  %v106 = vunpack.c.l.b16 %v58
  %v107 = vunpack.c.l.b16 %v59
  %v108 = vunpack.c.l.b16 %v60
  %v109 = vunpack.c.l.b16 %v61
  %v110 = vunpack.c.l.b16 %v62
  %v111 = vunpack.c.l.b16 %v63
  %v112 = vunpack.c.l.b16 %v64
  %v113 = vunpack.c.l.b16 %v65
  %v114 = vunpack.c.l.b16 %v66
  %v115 = vpack.c.b16 %v100, %v99
  %v116 = vpack.c.b16 %v102, %v101
  %v117 = vpack.c.b16 %v104, %v103
  %v118 = vpack.c.b16 %v106, %v105
  %v119 = vpack.c.b16 %v108, %v107
  %v120 = vpack.c.b16 %v110, %v109
  %v121 = vpack.c.b16 %v112, %v111
  %v122 = vpack.c.b16 %v114, %v113
  %v147 = vunpack.c.l.b16 %v67
  %v148 = vunpack.c.l.b16 %v68
  %v149 = vunpack.c.l.b16 %v69
  %v150 = vunpack.c.l.b16 %v70
  %v151 = vunpack.c.l.b16 %v71
  %v152 = vunpack.c.l.b16 %v72
  %v153 = vunpack.c.l.b16 %v73
  %v154 = vunpack.c.l.b16 %v74
  %v155 = vunpack.c.l.b16 %v75
  %v156 = vunpack.c.l.b16 %v76
  %v157 = vunpack.c.l.b16 %v77
  %v158 = vunpack.c.l.b16 %v78
  %v159 = vunpack.c.l.b16 %v79
  %v160 = vunpack.c.l.b16 %v80
  %v161 = vunpack.c.l.b16 %v81
  %v162 = vunpack.c.l.b16 %v82
  %v163 = vpack.c.b16 %v148, %v147
  %v164 = vpack.c.b16 %v150, %v149
  %v165 = vpack.c.b16 %v152, %v151
  %v166 = vpack.c.b16 %v154, %v153
  %v167 = vpack.c.b16 %v156, %v155
  %v168 = vpack.c.b16 %v158, %v157
  %v169 = vpack.c.b16 %v160, %v159
  %v170 = vpack.c.b16 %v162, %v161
  %179 = vmatprep.subr.bf16.mxu0 0
  %180 = vmatpush1.bf16.msra.mxu0 %v163
  %181 = vmatprep.subr.bf16.mxu0 0
  %182 = vmatpush1.bf16.msra.mxu0 %v164
  %183 = vmatprep.subr.bf16.mxu0 0
  %184 = vmatpush1.bf16.msra.mxu0 %v165
  %185 = vmatprep.subr.bf16.mxu0 0
  %186 = vmatpush1.bf16.msra.mxu0 %v166
  %187 = vmatprep.subr.bf16.mxu0 0
  %188 = vmatpush1.bf16.msra.mxu0 %v167
  %189 = vmatprep.subr.bf16.mxu0 0
  %190 = vmatpush1.bf16.msra.mxu0 %v168
  %191 = vmatprep.subr.bf16.mxu0 0
  %192 = vmatpush1.bf16.msra.mxu0 %v169
  %193 = vmatprep.subr.bf16.mxu0 0
  %194 = vmatpush1.bf16.msra.mxu0 %v170
  %195 = vmatprep.subr.bf16.mxu0 0
  %196 = vmatpush1.bf16.msra.mxu0 0
  %197 = vmatprep.subr.bf16.mxu0 0
  %198 = vmatpush1.bf16.msra.mxu0 0
  %199 = vmatprep.subr.bf16.mxu0 0
  %200 = vmatpush1.bf16.msra.mxu0 0
  %201 = vmatprep.subr.bf16.mxu0 0
  %202 = vmatpush1.bf16.msra.mxu0 0
  %203 = vmatprep.subr.bf16.mxu0 0
  %204 = vmatpush1.bf16.msra.mxu0 0
  %205 = vmatprep.subr.bf16.mxu0 0
  %206 = vmatpush1.bf16.msra.mxu0 0
  %207 = vmatprep.subr.bf16.mxu0 0
  %208 = vmatpush1.bf16.msra.mxu0 0
  %209 = vmatprep.subr.bf16.mxu0 0
  %210 = vmatpush1.bf16.msra.mxu0 0
  %211 = vmatprep.mubr.bf16.mxu0 0
  %212 = vmatmul.mubr.bf16.gmra.mrb[0].mxu0 %v115
  %v213 = vpop.f32.mrb[0].mxu0
  %v214 = vadd.f32 0.0, %v213
  %v215 = vpop.f32.mrb[0].mxu0
  %v216 = vpop.f32.mrb[0].mxu0
  %v217 = vadd.f32 0.0, %v216
  %v218 = vpop.f32.mrb[0].mxu0
  %219 = vmatprep.mubr.bf16.mxu0 0
  %220 = vmatmul.mubr.bf16.gmra.mrb[0].mxu0 %v116
  %v221 = vpop.f32.mrb[0].mxu0
  %v222 = vadd.f32 0.0, %v221
  %v223 = vpop.f32.mrb[0].mxu0
  %v224 = vpop.f32.mrb[0].mxu0
  %v225 = vadd.f32 0.0, %v224
  %v226 = vpop.f32.mrb[0].mxu0
  %227 = vmatprep.mubr.bf16.mxu0 0
  %228 = vmatmul.mubr.bf16.gmra.mrb[0].mxu0 %v117
  %v229 = vpop.f32.mrb[0].mxu0
  %v230 = vadd.f32 0.0, %v229
  %v231 = vpop.f32.mrb[0].mxu0
  %v232 = vpop.f32.mrb[0].mxu0
  %v233 = vadd.f32 0.0, %v232
  %v234 = vpop.f32.mrb[0].mxu0
  %235 = vmatprep.mubr.bf16.mxu0 0
  %236 = vmatmul.mubr.bf16.gmra.mrb[0].mxu0 %v118
  %v237 = vpop.f32.mrb[0].mxu0
  %v238 = vadd.f32 0.0, %v237
  %v239 = vpop.f32.mrb[0].mxu0
  %v240 = vpop.f32.mrb[0].mxu0
  %v241 = vadd.f32 0.0, %v240
  %v242 = vpop.f32.mrb[0].mxu0
  %243 = vmatprep.mubr.bf16.mxu0 0
  %244 = vmatmul.mubr.bf16.gmra.mrb[0].mxu0 %v119
  %v245 = vpop.f32.mrb[0].mxu0
  %v246 = vadd.f32 0.0, %v245
  %v247 = vpop.f32.mrb[0].mxu0
  %v248 = vpop.f32.mrb[0].mxu0
  %v249 = vadd.f32 0.0, %v248
  %v250 = vpop.f32.mrb[0].mxu0
  %251 = vmatprep.mubr.bf16.mxu0 0
  %252 = vmatmul.mubr.bf16.gmra.mrb[0].mxu0 %v120
  %v253 = vpop.f32.mrb[0].mxu0
  %v254 = vadd.f32 0.0, %v253
  %v255 = vpop.f32.mrb[0].mxu0
  %v256 = vpop.f32.mrb[0].mxu0
  %v257 = vadd.f32 0.0, %v256
  %v258 = vpop.f32.mrb[0].mxu0
  %259 = vmatprep.mubr.bf16.mxu0 0
  %260 = vmatmul.mubr.bf16.gmra.mrb[0].mxu0 %v121
  %v261 = vpop.f32.mrb[0].mxu0
  %v262 = vadd.f32 0.0, %v261
  %v263 = vpop.f32.mrb[0].mxu0
  %v264 = vpop.f32.mrb[0].mxu0
  %v265 = vadd.f32 0.0, %v264
  %v266 = vpop.f32.mrb[0].mxu0
  %267 = vmatprep.mubr.bf16.mxu0 0
  %268 = vmatmul.mubr.bf16.gmra.mrb[0].mxu0 %v122
  %v269 = vpop.f32.mrb[0].mxu0
  %v270 = vadd.f32 0.0, %v269
  %v271 = vpop.f32.mrb[0].mxu0
  %v272 = vpop.f32.mrb[0].mxu0
  %v273 = vadd.f32 0.0, %v272
  %v274 = vpop.f32.mrb[0].mxu0
  %275 = vdwg.mxu0
  %v276 = vadd.f32 %v35, %v214
  %v277 = vadd.f32 %v36, %v217
  %v278 = vadd.f32 %v37, %v222
  %v279 = vadd.f32 %v38, %v225
  %v280 = vadd.f32 %v39, %v230
  %v281 = vadd.f32 %v40, %v233
  %v282 = vadd.f32 %v41, %v238
  %v283 = vadd.f32 %v42, %v241
  %v284 = vadd.f32 %v43, %v246
  %v285 = vadd.f32 %v44, %v249
  %v286 = vadd.f32 %v45, %v254
  %v287 = vadd.f32 %v46, %v257
  %v288 = vadd.f32 %v47, %v262
  %v289 = vadd.f32 %v48, %v265
  %v290 = vadd.f32 %v49, %v270
  %v291 = vadd.f32 %v50, %v273
  %292 = vst [vmem:[#allocation2] sm:$0xff] %v276
  %293 = vst [vmem:[#allocation2 + $0x8] sm:$0xff] %v277
  %294 = vst [vmem:[#allocation2 + $0x10] sm:$0xff] %v278
  %295 = vst [vmem:[#allocation2 + $0x18] sm:$0xff] %v279
  %296 = vst [vmem:[#allocation2 + $0x20] sm:$0xff] %v280
  %297 = vst [vmem:[#allocation2 + $0x28] sm:$0xff] %v281
  %298 = vst [vmem:[#allocation2 + $0x30] sm:$0xff] %v282
  %299 = vst [vmem:[#allocation2 + $0x38] sm:$0xff] %v283
  %300 = vst [vmem:[#allocation2 + $0x40] sm:$0xff] %v284
  %301 = vst [vmem:[#allocation2 + $0x48] sm:$0xff] %v285
  %302 = vst [vmem:[#allocation2 + $0x50] sm:$0xff] %v286
  %303 = vst [vmem:[#allocation2 + $0x58] sm:$0xff] %v287
  %304 = vst [vmem:[#allocation2 + $0x60] sm:$0xff] %v288
  %305 = vst [vmem:[#allocation2 + $0x68] sm:$0xff] %v289
  %306 = vst [vmem:[#allocation2 + $0x70] sm:$0xff] %v290
  %307 = vst [vmem:[#allocation2 + $0x78] sm:$0xff] %v291
  // Predicated region
  $region18: #{homograph_forward.5} parent=0 // pred_check
    %p308 = pneg %p15
  $region19: #{homograph_forward.5} parent=0 // pred_check_branch
    %310 = sbr.rel (%p308) target = $region21
  $region20: #{homograph_forward.5} parent=0 // pred_region
    %v311 = vld [vmem:[#allocation2] sm:$0xff]
    %v312 = vld [vmem:[#allocation2 + $0x8] sm:$0xff]
    %v313 = vld [vmem:[#allocation2 + $0x10] sm:$0xff]
    %v314 = vld [vmem:[#allocation2 + $0x18] sm:$0xff]
    %v315 = vld [vmem:[#allocation2 + $0x20] sm:$0xff]
    %v316 = vld [vmem:[#allocation2 + $0x28] sm:$0xff]
    %v317 = vld [vmem:[#allocation2 + $0x30] sm:$0xff]
    %v318 = vld [vmem:[#allocation2 + $0x38] sm:$0xff]
    %v319 = vld [vmem:[#allocation2 + $0x40] sm:$0xff]
    %v320 = vld [vmem:[#allocation2 + $0x48] sm:$0xff]
    %v321 = vld [vmem:[#allocation2 + $0x50] sm:$0xff]
    %v322 = vld [vmem:[#allocation2 + $0x58] sm:$0xff]
    %v323 = vld [vmem:[#allocation2 + $0x60] sm:$0xff]
    %v324 = vld [vmem:[#allocation2 + $0x68] sm:$0xff]
    %v325 = vld [vmem:[#allocation2 + $0x70] sm:$0xff]
    %v326 = vld [vmem:[#allocation2 + $0x78] sm:$0xff]
    %v327 = vld [vmem:[%s2] sm:$0x1]
    %v329 = vlaneseq
    %v330 = vshrl.u32 %v329, 7
    %v331 = vsub.s32 0, %v330
    %v332 = vrot.slane %v327, %v331
    %v334 = vadd.f32 %v311, %v332
    %v335 = vadd.f32 %v312, %v332
    %v336 = vadd.f32 %v313, %v332
    %v337 = vadd.f32 %v314, %v332
    %v338 = vadd.f32 %v315, %v332
    %v339 = vadd.f32 %v316, %v332
    %v340 = vadd.f32 %v317, %v332
    %v341 = vadd.f32 %v318, %v332
    %v342 = vadd.f32 %v319, %v332
    %v343 = vadd.f32 %v320, %v332
    %v344 = vadd.f32 %v321, %v332
    %v345 = vadd.f32 %v322, %v332
    %v346 = vadd.f32 %v323, %v332
    %v347 = vadd.f32 %v324, %v332
    %v348 = vadd.f32 %v325, %v332
    %v349 = vadd.f32 %v326, %v332
    %v350 = vmax.f32 %v334, 0.0
    %v351 = vmax.f32 %v335, 0.0
    %v352 = vmax.f32 %v336, 0.0
    %v353 = vmax.f32 %v337, 0.0
    %v354 = vmax.f32 %v338, 0.0
    %v355 = vmax.f32 %v339, 0.0
    %v356 = vmax.f32 %v340, 0.0
    %v357 = vmax.f32 %v341, 0.0
    %v358 = vmax.f32 %v342, 0.0
    %v359 = vmax.f32 %v343, 0.0
    %v360 = vmax.f32 %v344, 0.0
    %v361 = vmax.f32 %v345, 0.0
    %v362 = vmax.f32 %v346, 0.0
    %v363 = vmax.f32 %v347, 0.0
    %v364 = vmax.f32 %v348, 0.0
    %v365 = vmax.f32 %v349, 0.0
    %366 = vst [vmem:[%s3] sm:$0xff] %v350
    %367 = vst [vmem:[%s3 + $0x8] sm:$0xff] %v351
    %368 = vst [vmem:[%s3 + $0x10] sm:$0xff] %v352
    %369 = vst [vmem:[%s3 + $0x18] sm:$0xff] %v353
    %370 = vst [vmem:[%s3 + $0x20] sm:$0xff] %v354
    %371 = vst [vmem:[%s3 + $0x28] sm:$0xff] %v355
    %372 = vst [vmem:[%s3 + $0x30] sm:$0xff] %v356
    %373 = vst [vmem:[%s3 + $0x38] sm:$0xff] %v357
    %374 = vst [vmem:[%s3 + $0x40] sm:$0xff] %v358
    %375 = vst [vmem:[%s3 + $0x48] sm:$0xff] %v359
    %376 = vst [vmem:[%s3 + $0x50] sm:$0xff] %v360
    %377 = vst [vmem:[%s3 + $0x58] sm:$0xff] %v361
    %378 = vst [vmem:[%s3 + $0x60] sm:$0xff] %v362
    %379 = vst [vmem:[%s3 + $0x68] sm:$0xff] %v363
    %380 = vst [vmem:[%s3 + $0x70] sm:$0xff] %v364
    %381 = vst [vmem:[%s3 + $0x78] sm:$0xff] %v365
  $region21: #{homograph_forward.5} parent=0 // pred_fallthru
    _
  // Predicated region
  $region22: #{homograph_forward.5} parent=0 // pred_check
    _
  $region23: #{homograph_forward.5} parent=0 // pred_check_branch
    %383 = sbr.rel (0) target = $region25
  $region24: #{homograph_forward.5} parent=0 // pred_region
    _
  $region25: #{homograph_forward.5} parent=0 // pred_fallthru
    _
  // Predicated region
  $region26: #{homograph_forward.5} parent=0 // pred_check
    _
  $region27: #{homograph_forward.5} parent=0 // pred_check_branch
    %385 = sbr.rel (0) target = $region29
  $region28: #{homograph_forward.5} parent=0 // pred_region
    _
  $region29: #{homograph_forward.5} parent=0 // pred_fallthru
    _

</llo_original>
